<compile_context>
chip_gen: v5e
topology: v5e:2x2
jax: 0.10.0
libtpu: 0.0.40
codegen_flags: <defaults>
</compile_context>

<pallas_src>
import jax
import jax.numpy as jnp
import numpy as np
from jax.experimental import pallas as pl
from jax.experimental.pallas import tpu as pltpu


# ------------------------------------------------------------------
# Parameter (buffer) construction — mirrors the PyTorch __init__ exactly.
# ------------------------------------------------------------------
def make_pos_encoding(feature_dim: int, max_len: int) -> jnp.ndarray:
    positions = np.arange(0, max_len, dtype=np.float32).reshape(-1, 1)          # (L, 1)
    division_term = np.exp(
        np.arange(0, feature_dim, 2, dtype=np.float32) * (-np.log(10000.0) / feature_dim)
    )                                                                            # (D/2,)
    pe = np.zeros((max_len, feature_dim), dtype=np.float32)
    pe[:, 0::2] = np.sin(positions * division_term)
    pe[:, 1::2] = np.cos(positions * division_term)
    # unsqueeze(0).transpose(0, 1) -> (max_len, 1, feature_dim)
    pe = pe[:, None, :]
    return jnp.asarray(pe)


# ------------------------------------------------------------------
# Pallas kernels (elementwise, HBM-bandwidth bound)
# ------------------------------------------------------------------
def _pe_add_kernel(x_ref, pe_ref, o_ref):
    # x_ref: (TS, B, D); pe_ref: (TS, 1, D) -> sublane-broadcast over batch.
    o_ref[...] = (x_ref[...] + pe_ref[...]).astype(o_ref.dtype)


def _pe_add_dropout_kernel(x_ref, pe_ref, m_ref, o_ref):
    # m_ref is the pre-scaled keep mask: Bernoulli(1-p) / (1-p)  (inverted dropout).
    o_ref[...] = ((x_ref[...] + pe_ref[...]) * m_ref[...]).astype(o_ref.dtype)


# ------------------------------------------------------------------
# Wrapper
# ------------------------------------------------------------------
def _pick_seq_tile(seq_len: int, row_bytes: int, target_tile_bytes: int) -> int:
    """Largest seq-tile whose x block is ~target_tile_bytes (single block if it fits)."""
    ts = max(1, min(seq_len, target_tile_bytes // max(1, row_bytes)))
    if ts < seq_len and ts >= 8:
        ts = (ts // 8) * 8   # keep DMA tiles sublane-aligned when tiling
    return int(ts)


def positional_encoding_forward(
    token_embedding: jnp.ndarray,     # (S, B, D)
    pos_encoding: jnp.ndarray,        # (max_len, 1, D)
    *,
    dropout_rate: float = 0.0,
    training: bool = False,
    rng_key=None,
    target_tile_bytes: int = 2 * 1024 * 1024,
    donate_input: bool = False,
) -> jnp.ndarray:
    S, B, D = token_embedding.shape
    max_len = pos_encoding.shape[0]
    if S > max_len:
        raise ValueError(f"sequence length {S} exceeds max_len {max_len}")

    dtype = token_embedding.dtype
    itemsize = jnp.dtype(dtype).itemsize
    ts = _pick_seq_tile(S, B * D * itemsize, target_tile_bytes)
    grid = (pl.cdiv(S, ts),)

    pe = pos_encoding[:S]             # (S, 1, D) — read once total by the kernel

    x_spec = pl.BlockSpec((ts, B, D), lambda s: (s, 0, 0))
    pe_spec = pl.BlockSpec((ts, 1, D), lambda s: (s, 0, 0))
    m_spec = pl.BlockSpec((ts, B, D), lambda s: (s, 0, 0))
    o_spec = pl.BlockSpec((ts, B, D), lambda s: (s, 0, 0))
    out_shape = jax.ShapeDtypeStruct((S, B, D), dtype)

    compiler_params = pltpu.CompilerParams(
        dimension_semantics=("parallel",),          # grid steps independent -> megacore-safe
        vmem_limit_bytes=32 * 1024 * 1024,          # > v5e's 16 MiB default, < v7x's 64 MiB VMEM
    )
    io_alias = {0: 0} if donate_input else {}

    # TODO(synk): for D < 128 a lane-dense (S, B*D) flattening with an in-kernel pe tile
    # would avoid masked stores; kept the (TS, B, D) sublane-broadcast form for robustness.
    if training and dropout_rate > 0.0:
        # TODO(synk): RNG stream is jax.random, not torch nn.Dropout's (no bitwise match possible).
        if rng_key is None:
            rng_key = jax.random.PRNGKey(0)
        keep_prob = 1.0 - float(dropout_rate)
        keep = jax.random.bernoulli(rng_key, p=keep_prob, shape=(S, B, D))
        mask = keep.astype(dtype) * jnp.asarray(1.0 / keep_prob, dtype)
        return pl.pallas_call(
            _pe_add_dropout_kernel,
            grid=grid,
            in_specs=[x_spec, pe_spec, m_spec],
            out_specs=o_spec,
            out_shape=out_shape,
            compiler_params=compiler_params,
            input_output_aliases=io_alias,
        )(token_embedding, pe, mask)
    else:
        # eval mode: dropout is identity
        return pl.pallas_call(
            _pe_add_kernel,
            grid=grid,
            in_specs=[x_spec, pe_spec],
            out_specs=o_spec,
            out_shape=out_shape,
            compiler_params=compiler_params,
            input_output_aliases=io_alias,
        )(token_embedding, pe)


# ------------------------------------------------------------------
# Test
# ------------------------------------------------------------------
if __name__ == "__main__":
    feature_dim = 32
    max_len = 16
    dropout = 0.1
    batch = 4

    pos_encoding = make_pos_encoding(feature_dim, max_len)
    key = jax.random.PRNGKey(0)
    k_x, k_x2, k_drop = jax.random.split(key, 3)

    # --- eval mode, single-block fast path --------------------------------
    seq_len = 8
    x = jax.random.normal(k_x, (seq_len, batch, feature_dim), dtype=jnp.float32)
    out = positional_encoding_forward(x, pos_encoding, dropout_rate=dropout, training=False)
    out = jax.block_until_ready(out)
    ref = x + pos_encoding[:seq_len]
    np.testing.assert_allclose(np.asarray(out), np.asarray(ref), rtol=1e-6, atol=1e-6)

    # --- eval mode, multi-block path (forces ts=8 < S=12, partial last block)
    seq_len2 = 12
    x2 = jax.random.normal(k_x2, (seq_len2, batch, feature_dim), dtype=jnp.float32)
    out2 = positional_encoding_forward(
        x2, pos_encoding, dropout_rate=dropout, training=False,
        target_tile_bytes=8 * batch * feature_dim * 4)
    out2 = jax.block_until_ready(out2)
    ref2 = x2 + pos_encoding[:seq_len2]
    np.testing.assert_allclose(np.asarray(out2), np.asarray(ref2), rtol=1e-6, atol=1e-6)

    # --- training mode (inverted dropout via precomputed keep mask) -------
    out_train = positional_encoding_forward(
        x, pos_encoding, dropout_rate=dropout, training=True, rng_key=k_drop)
    out_train = jax.block_until_ready(out_train)
    keep_prob = 1.0 - dropout
    keep = jax.random.bernoulli(k_drop, p=keep_prob, shape=x.shape)
    mask_ref = keep.astype(x.dtype) * jnp.asarray(1.0 / keep_prob, x.dtype)
    ref_train = (x + pos_encoding[:seq_len]) * mask_ref
    np.testing.assert_allclose(np.asarray(out_train), np.asarray(ref_train),
                               rtol=1e-6, atol=1e-6)
    assert out_train.shape == x.shape and out_train.dtype == x.dtype

    print("KERNEL_OK")
</pallas_src>

<mosaic_0001>
module attributes {stable_mosaic.version = 11 : i64} {
  func.func @_pe_add_kernel(%arg0: i32, %arg1: memref<8x4x32xf32, #tpu.memory_space<vmem>>, %arg2: memref<8x1x32xf32, #tpu.memory_space<vmem>>, %arg3: memref<8x4x32xf32, #tpu.memory_space<vmem>>) attributes {dimension_semantics = [#tpu.dimension_semantics<parallel>], iteration_bounds = array<i64: 1>, scalar_prefetch = 0 : i64, scratch_operands = 0 : i64, tpu.core_type = #tpu.core_type<tc>, window_params = [{transform_indices = @transform_0, window_bounds = array<i64: 8, 4, 32>}, {transform_indices = @transform_1, window_bounds = array<i64: 8, 1, 32>}, {transform_indices = @transform_2, window_bounds = array<i64: 8, 4, 32>}]} {
    %c0 = arith.constant 0 : index
    %c0_0 = arith.constant 0 : index
    %c0_1 = arith.constant 0 : index
    %0 = vector.load %arg1[%c0, %c0_0, %c0_1] : memref<8x4x32xf32, #tpu.memory_space<vmem>>, vector<8x4x32xf32>
    %c0_2 = arith.constant 0 : index
    %c0_3 = arith.constant 0 : index
    %c0_4 = arith.constant 0 : index
    %1 = vector.load %arg2[%c0_2, %c0_3, %c0_4] : memref<8x1x32xf32, #tpu.memory_space<vmem>>, vector<8x1x32xf32>
    %2 = vector.broadcast %1 : vector<8x1x32xf32> to vector<8x4x32xf32>
    %3 = arith.addf %0, %2 : vector<8x4x32xf32>
    %c0_5 = arith.constant 0 : index
    %c0_6 = arith.constant 0 : index
    %c0_7 = arith.constant 0 : index
    %4 = vector.load %arg3[%c0_5, %c0_6, %c0_7] : memref<8x4x32xf32, #tpu.memory_space<vmem>>, vector<8x4x32xf32>
    tpu.vector_store %arg3[%c0_5, %c0_6, %c0_7], %3 {strides = array<i32>} : memref<8x4x32xf32, #tpu.memory_space<vmem>>, vector<8x4x32xf32>,
    return
  }
  func.func @transform_0(%arg0: i32) -> (i32, i32, i32) {
    %c0_i32 = arith.constant 0 : i32
    %c0_i32_0 = arith.constant 0 : i32
    %c0_i32_1 = arith.constant 0 : i32
    return %arg0, %c0_i32, %c0_i32_0 : i32, i32, i32
  }
  func.func @transform_1(%arg0: i32) -> (i32, i32, i32) {
    %c0_i32 = arith.constant 0 : i32
    %c0_i32_0 = arith.constant 0 : i32
    %c0_i32_1 = arith.constant 0 : i32
    return %arg0, %c0_i32, %c0_i32_0 : i32, i32, i32
  }
  func.func @transform_2(%arg0: i32) -> (i32, i32, i32) {
    %c0_i32 = arith.constant 0 : i32
    %c0_i32_0 = arith.constant 0 : i32
    %c0_i32_1 = arith.constant 0 : i32
    return %arg0, %c0_i32, %c0_i32_0 : i32, i32, i32
  }
}

</mosaic_0001>

<llo_original>
// kernel: tpu_custom_call.1
$region0: #{tpu_custom_call.1}
  #allocation0 [shape = 'u32[]', space=smem, size = 0x4, offset = 0x4, fixed_abs, tag = 'smem constant byte address 0x4 - core index']
  #allocation1 [shape = 'u32[72,128]{1,0:T(1,128)}', space=vmem, size = 0x9000, scoped, tag = 'internal scratch']
  %s0 = inlined_call_operand.hbm [shape: f32[8,4,32], index: 0, kind: input, shape index: {}]
  %s1 = inlined_call_operand.hbm [shape: f32[8,1,32], index: 1, kind: input, shape index: {}]
  %s2 = inlined_call_operand.hbm [shape: f32[8,4,32], index: 2, kind: output, shape index: {}]
  %s3 = sld [smem:[#allocation0]]
  $region26: #{tpu_custom_call.1} parent=0
    _
  %s5 = ssub.s32 1, %s3
  %s6 = scalar_select 0, %s5, %s3
  $region1: #{tpu_custom_call.1} parent=0
    #allocation2 [shape = 'u8[16384]{0}', space=vmem, size = 0x4000, scoped, tag = 'input window, operand 0, single buffered']
    #allocation3 [shape = 's32[1]{0}', space=sflag, size = 0x4, scoped, tag = 'scoped memory for tpu_custom_call.1']
    #allocation4 [shape = 's32[1]{0}', space=sflag, size = 0x4, scoped, tag = 'scoped memory for tpu_custom_call.1']
    #allocation5 [shape = 'u8[4096]{0}', space=vmem, size = 0x1000, scoped, tag = 'input window, operand 1, single buffered']
    #allocation6 [shape = 's32[1]{0}', space=sflag, size = 0x4, scoped, tag = 'scoped memory for tpu_custom_call.1']
    #allocation7 [shape = 'u8[16384]{0}', space=vmem, size = 0x4000, scoped, tag = 'output window, operand 0, single buffered']
    %7 = vsyncpa [#allocation3], 0
    %8 = vsyncpa [#allocation6], 0
    %9 = vsyncpa [#allocation4], 0
    // Predicated region
    $region2: #{tpu_custom_call.1} parent=1 // pred_check
      _
    $region3: #{tpu_custom_call.1} parent=1 // pred_check_branch
      %11 = sbr.rel (0) target = $region5
    $region4: #{tpu_custom_call.1} parent=1 // pred_region
      %13 = vsyncadd [#allocation3], 0
      %s14 = sshll.u32 %s0, 4
      %s15 = int_to_ptr.hbm [resolvable:$true] %s14
      %s16 = sshll.u32 [#allocation2], 4
      %s17 = int_to_ptr.vmem [resolvable:$true] %s16
      %22 = dma.hbm_to_vmem [thread:$0]  %s15, 512, %s17, [#allocation3], 64, 64, 4
    $region5: #{tpu_custom_call.1} parent=1 // pred_fallthru
      _
    // Predicated region
    $region6: #{tpu_custom_call.1} parent=1 // pred_check
      _
    $region7: #{tpu_custom_call.1} parent=1 // pred_check_branch
      %24 = sbr.rel (0) target = $region9
    $region8: #{tpu_custom_call.1} parent=1 // pred_region
      %26 = vsyncadd [#allocation6], 0
      %s27 = sshll.u32 %s1, 4
      %s28 = int_to_ptr.hbm [resolvable:$true] %s27
      %s29 = sshll.u32 [#allocation5], 4
      %s30 = int_to_ptr.vmem [resolvable:$true] %s29
      %35 = dma.hbm_to_vmem [thread:$0]  %s28, 128, %s30, [#allocation6], 16, 16, 1
    $region9: #{tpu_custom_call.1} parent=1 // pred_fallthru
      _
    // Predicated region
    $region10: #{tpu_custom_call.1} parent=1 // pred_check
      _
    $region11: #{tpu_custom_call.1} parent=1 // pred_check_branch
      %37 = sbr.rel (0) target = $region13
    $region12: #{tpu_custom_call.1} parent=1 // pred_region
      %39 = dma.done [#allocation3], 512
    $region13: #{tpu_custom_call.1} parent=1 // pred_fallthru
      _
    // Predicated region
    $region14: #{tpu_custom_call.1} parent=1 // pred_check
      _
    $region15: #{tpu_custom_call.1} parent=1 // pred_check_branch
      %41 = sbr.rel (0) target = $region17
    $region16: #{tpu_custom_call.1} parent=1 // pred_region
      %43 = dma.done [#allocation6], 128
    $region17: #{tpu_custom_call.1} parent=1 // pred_fallthru
      _
    %v44 = vld [vmem:[#allocation2] sm:$0xf]
    %v45 = vld [vmem:[#allocation2 + $0x4] sm:$0xf]
    %v46 = vld [vmem:[#allocation2 + $0x8] sm:$0xf]
    %v47 = vld [vmem:[#allocation2 + $0xc] sm:$0xf]
    %v48 = vld [vmem:[#allocation2 + $0x10] sm:$0xf]
    %v49 = vld [vmem:[#allocation2 + $0x14] sm:$0xf]
    %v50 = vld [vmem:[#allocation2 + $0x18] sm:$0xf]
    %v51 = vld [vmem:[#allocation2 + $0x1c] sm:$0xf]
    %v52 = vld [vmem:[#allocation5] sm:$0x1]
    %v53 = vld [vmem:[#allocation5 + $0x1] sm:$0x1]
    %v54 = vld [vmem:[#allocation5 + $0x2] sm:$0x1]
    %v55 = vld [vmem:[#allocation5 + $0x3] sm:$0x1]
    %v56 = vld [vmem:[#allocation5 + $0x4] sm:$0x1]
    %v57 = vld [vmem:[#allocation5 + $0x5] sm:$0x1]
    %v58 = vld [vmem:[#allocation5 + $0x6] sm:$0x1]
    %v59 = vld [vmem:[#allocation5 + $0x7] sm:$0x1]
    %v68 = vperm.slane %v52, 0
    %v69 = vperm.slane %v53, 0
    %v70 = vperm.slane %v54, 0
    %v71 = vperm.slane %v55, 0
    %v72 = vperm.slane %v56, 0
    %v73 = vperm.slane %v57, 0
    %v74 = vperm.slane %v58, 0
    %v75 = vperm.slane %v59, 0
    %v84 = vadd.f32 %v44, %v68
    %v85 = vadd.f32 %v45, %v69
    %v86 = vadd.f32 %v46, %v70
    %v87 = vadd.f32 %v47, %v71
    %v88 = vadd.f32 %v48, %v72
    %v89 = vadd.f32 %v49, %v73
    %v90 = vadd.f32 %v50, %v74
    %v91 = vadd.f32 %v51, %v75
    %vm92 = vcmask 257024
    %93 = vst.msk [vmem:[#allocation7] sm:$0xf] %vm92, %v84
    %94 = vst.msk [vmem:[#allocation7 + $0x4] sm:$0xf] %vm92, %v85
    %95 = vst.msk [vmem:[#allocation7 + $0x8] sm:$0xf] %vm92, %v86
    %96 = vst.msk [vmem:[#allocation7 + $0xc] sm:$0xf] %vm92, %v87
    %97 = vst.msk [vmem:[#allocation7 + $0x10] sm:$0xf] %vm92, %v88
    %98 = vst.msk [vmem:[#allocation7 + $0x14] sm:$0xf] %vm92, %v89
    %99 = vst.msk [vmem:[#allocation7 + $0x18] sm:$0xf] %vm92, %v90
    %100 = vst.msk [vmem:[#allocation7 + $0x1c] sm:$0xf] %vm92, %v91
    // Predicated region
    $region18: #{tpu_custom_call.1} parent=1 // pred_check
      _
    $region19: #{tpu_custom_call.1} parent=1 // pred_check_branch
      %102 = sbr.rel (0) target = $region21
    $region20: #{tpu_custom_call.1} parent=1 // pred_region
      %104 = vsyncadd [#allocation4], 0
      %s105 = sshll.u32 [#allocation7], 4
      %s106 = int_to_ptr.vmem [resolvable:$true] %s105
      %s107 = sshll.u32 %s2, 4
      %s108 = int_to_ptr.hbm [resolvable:$true] %s107
      %113 = dma.vmem_to_hbm [thread:$0]  %s106, 512, %s108, [#allocation4], 64, 64, 4
    $region21: #{tpu_custom_call.1} parent=1 // pred_fallthru
      _
    // Predicated region
    $region22: #{tpu_custom_call.1} parent=1 // pred_check
      _
    $region23: #{tpu_custom_call.1} parent=1 // pred_check_branch
      %115 = sbr.rel (0) target = $region25
    $region24: #{tpu_custom_call.1} parent=1 // pred_region
      %117 = dma.done [#allocation4], 512
    $region25: #{tpu_custom_call.1} parent=1 // pred_fallthru
      _
    %118 = vsyncpa [#allocation3], 1
    %119 = vsyncpa [#allocation6], 1
    %120 = vsyncpa [#allocation4], 1

</llo_original>
